<compile_context>
chip_gen: v6e
topology: v6e:2x2x1
jax: 0.10.0
libtpu: 0.0.40
codegen_flags: <defaults>
</compile_context>

<pallas_src>
import functools

import jax
import jax.numpy as jnp
from jax import lax
from jax.experimental import pallas as pl
from jax.experimental.pallas import tpu as pltpu

EPS = 1e-8  # F.cosine_similarity default eps


def _round_up(x, m):
    return (x + m - 1) // m * m


def clap_score_kernel(af_ref, tf_ref, w_ref, cos_ref, stats_ref,
                      sum_sc, sumsq_sc, *, batch):
    i = pl.program_id(0)
    nsteps = pl.num_programs(0)
    tb = af_ref.shape[0]
    d = w_ref.shape[1] // 2

    @pl.when(i == 0)
    def _():
        sum_sc[...] = jnp.zeros_like(sum_sc)
        sumsq_sc[...] = jnp.zeros_like(sumsq_sc)

    # Fused projection heads: one bf16 MXU pass, f32 accumulation.
    #   feats = [audio_tile ; text_tile]  : (2*TB, F)
    #   w     = [W_audio | W_text]        : (F, 2*D)
    feats = jnp.concatenate([af_ref[...], tf_ref[...]], axis=0)
    proj = jnp.dot(feats, w_ref[...], preferred_element_type=jnp.float32)
    gen = proj[:tb, :d]        # audio_tile @ W_audio
    ref = proj[tb:, d:]        # text_tile  @ W_text

    # One fused cross-lane reduction for <gen,ref>, ||gen||^2, ||ref||^2.
    prods = jnp.concatenate([gen * ref, gen * gen, ref * ref], axis=0)  # (3*TB, D)
    red = jnp.sum(prods, axis=-1, keepdims=True)                        # (3*TB, 1)
    dot = red[:tb]
    n1sq = red[tb:2 * tb]
    n2sq = red[2 * tb:]

    # Cosine along dim=1 with PyTorch eps semantics, via EUP rsqrt:
    # dot / (max(||g||,eps)*max(||r||,eps)) == dot*rsqrt(max(||g||^2,eps^2))*rsqrt(...)
    inv = lax.rsqrt(jnp.maximum(n1sq, EPS * EPS)) * lax.rsqrt(jnp.maximum(n2sq, EPS * EPS))
    cos = dot * inv                        # (TB, 1)
    cos_row = cos.reshape(1, tb)           # (1, TB): lane-dense store
    cos_ref[...] = cos_row

    # Running sum / sum-of-squares over the *valid* batch rows only
    # (padded rows contribute nothing to mean/std).
    lane = lax.broadcasted_iota(jnp.int32, (1, tb), 1)
    valid = (i * tb + lane) < batch
    cmask = jnp.where(valid, cos_row, 0.0)
    sum_sc[...] += jnp.sum(cmask, axis=1, keepdims=True)
    sumsq_sc[...] += jnp.sum(cmask * cmask, axis=1, keepdims=True)

    @pl.when(i == nsteps - 1)
    def _():
        s = sum_sc[...]
        ss = sumsq_sc[...]
        mean = s / batch
        # torch .std() is unbiased (ddof=1); batch == 1 -> NaN, like PyTorch.
        denom = float(batch - 1) if batch > 1 else float("nan")
        var = jnp.maximum(ss - s * s / batch, 0.0) / denom
        stats_ref[:, 0:1] = mean
        stats_ref[:, 1:2] = jnp.sqrt(var)


def clap_score(audio_feat, text_feat, w_audio, w_text):
    """Returns (cos [B], mean scalar, std scalar) for the CLAP-score math."""
    B, F = audio_feat.shape
    D = w_audio.shape[1]

    # Batch tiling: TB <= 128 keeps per-step double-buffered VMEM footprint
    # tiny on every generation (well under v7x's 64 MiB VMEM).
    TB = 128 if B > 128 else _round_up(max(B, 1), 8)
    Bp = _round_up(B, TB)
    nsteps = Bp // TB

    # bf16 MXU operands (halves HBM->VMEM DMA bytes); f32 accumulation inside
    # the kernel.  Both projection heads fused along lanes into one resident RHS.
    af = audio_feat.astype(jnp.bfloat16)
    tf = text_feat.astype(jnp.bfloat16)
    w_fused = jnp.concatenate([w_audio, w_text], axis=1).astype(jnp.bfloat16)
    if Bp != B:
        af = jnp.pad(af, ((0, Bp - B), (0, 0)))
        tf = jnp.pad(tf, ((0, Bp - B), (0, 0)))

    kernel = functools.partial(clap_score_kernel, batch=B)
    cos, stats = pl.pallas_call(
        kernel,
        out_shape=(
            jax.ShapeDtypeStruct((1, Bp), jnp.float32),   # cosine sims, lane-dense
            jax.ShapeDtypeStruct((1, 2), jnp.float32),    # [mean, std]
        ),
        grid_spec=pltpu.PrefetchScalarGridSpec(
            num_scalar_prefetch=0,
            grid=(nsteps,),
            in_specs=[
                pl.BlockSpec((TB, F), lambda i: (i, 0)),
                pl.BlockSpec((TB, F), lambda i: (i, 0)),
                pl.BlockSpec((F, 2 * D), lambda i: (0, 0)),   # weights stay resident
            ],
            out_specs=(
                pl.BlockSpec((1, TB), lambda i: (0, i)),
                pl.BlockSpec((1, 2), lambda i: (0, 0)),
            ),
            scratch_shapes=[
                pltpu.VMEM((1, 1), jnp.float32),   # running sum(cos)
                pltpu.VMEM((1, 1), jnp.float32),   # running sum(cos^2)
            ],
        ),
        # Batch axis carries the mean/std accumulator -> "arbitrary".
        # TODO(synk): per-core partial sums + a combine step would let this axis
        # be "parallel" across v7x's two TensorCores.
        compiler_params=pltpu.CompilerParams(dimension_semantics=("arbitrary",)),
    )(af, tf, w_fused)

    return cos[0, :B], stats[0, 0], stats[0, 1]


def clap_score_ref(audio_feat, text_feat, w_audio, w_text):
    # Reference applies the same bf16 operand rounding the kernel uses; all
    # other math in f32, matching PyTorch cosine_similarity / mean / std(ddof=1).
    af = audio_feat.astype(jnp.bfloat16).astype(jnp.float32)
    tf = text_feat.astype(jnp.bfloat16).astype(jnp.float32)
    wa = w_audio.astype(jnp.bfloat16).astype(jnp.float32)
    wt = w_text.astype(jnp.bfloat16).astype(jnp.float32)
    gen = af @ wa
    ref = tf @ wt
    dot = jnp.sum(gen * ref, axis=-1)
    n1 = jnp.sqrt(jnp.sum(gen * gen, axis=-1))
    n2 = jnp.sqrt(jnp.sum(ref * ref, axis=-1))
    cos = dot / (jnp.maximum(n1, EPS) * jnp.maximum(n2, EPS))
    return cos, jnp.mean(cos), jnp.std(cos, ddof=1)


if __name__ == "__main__":
    # B audio/text pairs, F encoder feature dim, D CLAP embedding dim.
    B, F, D = 8, 256, 128
    key = jax.random.PRNGKey(0)
    k0, k1, k2, k3 = jax.random.split(key, 4)

    audio_feat = jax.random.normal(k0, (B, F), dtype=jnp.float32)
    text_feat = jax.random.normal(k1, (B, F), dtype=jnp.float32)
    # Deterministic synthetic projection-head weights (stand-ins for CLAP's
    # audio_projection / text_projection from the checkpoint).
    # TODO(synk): HTSAT audio tower + RoBERTa text tower (and tokenizer /
    # librosa I/O / checkpoint loading) are external pretrained components and
    # are not reproduced here.
    w_audio = jax.random.normal(k2, (F, D), dtype=jnp.float32) * (1.0 / F ** 0.5)
    w_text = jax.random.normal(k3, (F, D), dtype=jnp.float32) * (1.0 / F ** 0.5)

    cos, mean, std = clap_score(audio_feat, text_feat, w_audio, w_text)
    jax.block_until_ready((cos, mean, std))

    cos_r, mean_r, std_r = clap_score_ref(audio_feat, text_feat, w_audio, w_text)
    assert jnp.allclose(cos, cos_r, atol=1e-3, rtol=1e-3), (cos, cos_r)
    assert jnp.allclose(mean, mean_r, atol=1e-3, rtol=1e-3), (mean, mean_r)
    assert jnp.allclose(std, std_r, atol=1e-3, rtol=1e-3), (std, std_r)

    print("KERNEL_OK")
</pallas_src>

<mosaic_0001>
module attributes {stable_mosaic.version = 11 : i64} {
  func.func @clap_score_kernel(%arg0: i32, %arg1: memref<8x256xbf16, #tpu.memory_space<vmem>>, %arg2: memref<8x256xbf16, #tpu.memory_space<vmem>>, %arg3: memref<256x256xbf16, #tpu.memory_space<vmem>>, %arg4: memref<1x8xf32, #tpu.memory_space<vmem>>, %arg5: memref<1x2xf32, #tpu.memory_space<vmem>>, %arg6: memref<1x1xf32, #tpu.memory_space<vmem>>, %arg7: memref<1x1xf32, #tpu.memory_space<vmem>>) attributes {dimension_semantics = [#tpu.dimension_semantics<arbitrary>], iteration_bounds = array<i64: 1>, scalar_prefetch = 0 : i64, scratch_operands = 2 : i64, tpu.core_type = #tpu.core_type<tc>, window_params = [{transform_indices = @transform_0, window_bounds = array<i64: 8, 256>}, {transform_indices = @transform_1, window_bounds = array<i64: 8, 256>}, {pipeline_mode = #tpu.pipeline_mode<synchronous>, transform_indices = @transform_2, window_bounds = array<i64: 256, 256>}, {transform_indices = @transform_3, window_bounds = array<i64: 1, 8>}, {pipeline_mode = #tpu.pipeline_mode<synchronous>, transform_indices = @transform_4, window_bounds = array<i64: 1, 2>}]} {
    %c0_i32 = arith.constant 0 : i32
    %0 = arith.cmpi eq, %arg0, %c0_i32 : i32
    %1 = arith.extui %0 : i1 to i32
    %c0_i32_0 = arith.constant 0 : i32
    %2 = arith.cmpi ne, %1, %c0_i32_0 : i32
    scf.if %2 {
      %cst_25 = arith.constant 0.000000e+00 : f32
      %51 = vector.broadcast %cst_25 : f32 to vector<1x1xf32>
      %c0_26 = arith.constant 0 : index
      %c0_27 = arith.constant 0 : index
      %52 = vector.load %arg6[%c0_26, %c0_27] : memref<1x1xf32, #tpu.memory_space<vmem>>, vector<1x1xf32>
      tpu.vector_store %arg6[%c0_26, %c0_27], %51 {strides = array<i32>} : memref<1x1xf32, #tpu.memory_space<vmem>>, vector<1x1xf32>,
      %cst_28 = arith.constant 0.000000e+00 : f32
      %53 = vector.broadcast %cst_28 : f32 to vector<1x1xf32>
      %c0_29 = arith.constant 0 : index
      %c0_30 = arith.constant 0 : index
      %54 = vector.load %arg7[%c0_29, %c0_30] : memref<1x1xf32, #tpu.memory_space<vmem>>, vector<1x1xf32>
      tpu.vector_store %arg7[%c0_29, %c0_30], %53 {strides = array<i32>} : memref<1x1xf32, #tpu.memory_space<vmem>>, vector<1x1xf32>,
    } else {
    }
    %c0 = arith.constant 0 : index
    %c0_1 = arith.constant 0 : index
    %3 = vector.load %arg1[%c0, %c0_1] : memref<8x256xbf16, #tpu.memory_space<vmem>>, vector<8x256xbf16>
    %c0_2 = arith.constant 0 : index
    %c0_3 = arith.constant 0 : index
    %4 = vector.load %arg2[%c0_2, %c0_3] : memref<8x256xbf16, #tpu.memory_space<vmem>>, vector<8x256xbf16>
    %5 = tpu.concatenate %3, %4 in 0 : vector<8x256xbf16>, vector<8x256xbf16> -> vector<16x256xbf16>
    %c0_4 = arith.constant 0 : index
    %c0_5 = arith.constant 0 : index
    %6 = vector.load %arg3[%c0_4, %c0_5] : memref<256x256xbf16, #tpu.memory_space<vmem>>, vector<256x256xbf16>
    %cst = arith.constant dense<0.000000e+00> : vector<16x256xf32>
    %7 = tpu.matmul %5, %6, %cst {dimension_numbers = #tpu.dot_dimension_numbers<[1], [0], [0], [1], [0, 0, 1, 1], [], []>} : vector<16x256xbf16>, vector<256x256xbf16>, vector<16x256xf32> -> vector<16x256xf32>
    %8 = vector.extract_strided_slice %7 {offsets = [0, 0], sizes = [8, 128], strides = [1, 1]} : vector<16x256xf32> to vector<8x128xf32>
    %9 = vector.extract_strided_slice %7 {offsets = [8, 128], sizes = [8, 128], strides = [1, 1]} : vector<16x256xf32> to vector<8x128xf32>
    %10 = arith.mulf %8, %9 : vector<8x128xf32>
    %11 = arith.mulf %8, %8 : vector<8x128xf32>
    %12 = arith.mulf %9, %9 : vector<8x128xf32>
    %13 = tpu.concatenate %10, %11, %12 in 0 : vector<8x128xf32>, vector<8x128xf32>, vector<8x128xf32> -> vector<24x128xf32>
    %cst_6 = arith.constant dense<0.000000e+00> : vector<24xf32>
    %14 = vector.multi_reduction <add>, %13, %cst_6 [1] : vector<24x128xf32> to vector<24xf32>
    %15 = vector.shape_cast %14 : vector<24xf32> to vector<24x1xf32>
    %16 = vector.extract_strided_slice %15 {offsets = [0, 0], sizes = [8, 1], strides = [1, 1]} : vector<24x1xf32> to vector<8x1xf32>
    %17 = vector.extract_strided_slice %15 {offsets = [8, 0], sizes = [8, 1], strides = [1, 1]} : vector<24x1xf32> to vector<8x1xf32>
    %18 = vector.extract_strided_slice %15 {offsets = [16, 0], sizes = [8, 1], strides = [1, 1]} : vector<24x1xf32> to vector<8x1xf32>
    %cst_7 = arith.constant 1.000000e-16 : f32
    %19 = vector.broadcast %cst_7 : f32 to vector<8x1xf32>
    %20 = arith.maximumf %17, %19 : vector<8x1xf32>
    %21 = math.rsqrt %20 : vector<8x1xf32>
    %cst_8 = arith.constant 1.000000e-16 : f32
    %22 = vector.broadcast %cst_8 : f32 to vector<8x1xf32>
    %23 = arith.maximumf %18, %22 : vector<8x1xf32>
    %24 = math.rsqrt %23 : vector<8x1xf32>
    %25 = arith.mulf %21, %24 : vector<8x1xf32>
    %26 = arith.mulf %16, %25 : vector<8x1xf32>
    %27 = vector.shape_cast %26 : vector<8x1xf32> to vector<1x8xf32>
    %c0_9 = arith.constant 0 : index
    %c0_10 = arith.constant 0 : index
    %28 = vector.load %arg4[%c0_9, %c0_10] : memref<1x8xf32, #tpu.memory_space<vmem>>, vector<1x8xf32>
    tpu.vector_store %arg4[%c0_9, %c0_10], %27 {strides = array<i32>} : memref<1x8xf32, #tpu.memory_space<vmem>>, vector<1x8xf32>,
    %29 = tpu.iota {dimensions = array<i32: 1>} : vector<1x8xi32>
    %c8_i32 = arith.constant 8 : i32
    %30 = arith.muli %arg0, %c8_i32 : i32
    %31 = vector.broadcast %30 : i32 to vector<1x8xi32>
    %32 = arith.addi %31, %29 : vector<1x8xi32>
    %c8_i32_11 = arith.constant 8 : i32
    %33 = vector.broadcast %c8_i32_11 : i32 to vector<1x8xi32>
    %34 = arith.cmpi slt, %32, %33 : vector<1x8xi32>
    %cst_12 = arith.constant 0.000000e+00 : f32
    %35 = vector.broadcast %cst_12 : f32 to vector<1x8xf32>
    %36 = arith.select %34, %27, %35 : vector<1x8xi1>, vector<1x8xf32>
    %c0_13 = arith.constant 0 : index
    %c0_14 = arith.constant 0 : index
    %37 = vector.load %arg6[%c0_13, %c0_14] : memref<1x1xf32, #tpu.memory_space<vmem>>, vector<1x1xf32>
    %cst_15 = arith.constant dense<0.000000e+00> : vector<1xf32>
    %38 = vector.multi_reduction <add>, %36, %cst_15 [1] : vector<1x8xf32> to vector<1xf32>
    %39 = vector.shape_cast %38 : vector<1xf32> to vector<1x1xf32>
    %40 = arith.addf %37, %39 : vector<1x1xf32>
    %c0_16 = arith.constant 0 : index
    %c0_17 = arith.constant 0 : index
    %41 = vector.load %arg6[%c0_16, %c0_17] : memref<1x1xf32, #tpu.memory_space<vmem>>, vector<1x1xf32>
    tpu.vector_store %arg6[%c0_16, %c0_17], %40 {strides = array<i32>} : memref<1x1xf32, #tpu.memory_space<vmem>>, vector<1x1xf32>,
    %c0_18 = arith.constant 0 : index
    %c0_19 = arith.constant 0 : index
    %42 = vector.load %arg7[%c0_18, %c0_19] : memref<1x1xf32, #tpu.memory_space<vmem>>, vector<1x1xf32>
    %43 = arith.mulf %36, %36 : vector<1x8xf32>
    %cst_20 = arith.constant dense<0.000000e+00> : vector<1xf32>
    %44 = vector.multi_reduction <add>, %43, %cst_20 [1] : vector<1x8xf32> to vector<1xf32>
    %45 = vector.shape_cast %44 : vector<1xf32> to vector<1x1xf32>
    %46 = arith.addf %42, %45 : vector<1x1xf32>
    %c0_21 = arith.constant 0 : index
    %c0_22 = arith.constant 0 : index
    %47 = vector.load %arg7[%c0_21, %c0_22] : memref<1x1xf32, #tpu.memory_space<vmem>>, vector<1x1xf32>
    tpu.vector_store %arg7[%c0_21, %c0_22], %46 {strides = array<i32>} : memref<1x1xf32, #tpu.memory_space<vmem>>, vector<1x1xf32>,
    %c0_i32_23 = arith.constant 0 : i32
    %48 = arith.cmpi eq, %arg0, %c0_i32_23 : i32
    %49 = arith.extui %48 : i1 to i32
    %c0_i32_24 = arith.constant 0 : i32
    %50 = arith.cmpi ne, %49, %c0_i32_24 : i32
    scf.if %50 {
      %c0_25 = arith.constant 0 : index
      %c0_26 = arith.constant 0 : index
      %51 = vector.load %arg6[%c0_25, %c0_26] : memref<1x1xf32, #tpu.memory_space<vmem>>, vector<1x1xf32>
      %c0_27 = arith.constant 0 : index
      %c0_28 = arith.constant 0 : index
      %52 = vector.load %arg7[%c0_27, %c0_28] : memref<1x1xf32, #tpu.memory_space<vmem>>, vector<1x1xf32>
      %cst_29 = arith.constant 8.000000e+00 : f32
      %53 = vector.broadcast %cst_29 : f32 to vector<1x1xf32>
      %54 = arith.divf %51, %53 : vector<1x1xf32>
      %55 = arith.mulf %51, %51 : vector<1x1xf32>
      %cst_30 = arith.constant 8.000000e+00 : f32
      %56 = vector.broadcast %cst_30 : f32 to vector<1x1xf32>
      %57 = arith.divf %55, %56 : vector<1x1xf32>
      %58 = arith.subf %52, %57 : vector<1x1xf32>
      %cst_31 = arith.constant 0.000000e+00 : f32
      %59 = vector.broadcast %cst_31 : f32 to vector<1x1xf32>
      %60 = arith.maximumf %58, %59 : vector<1x1xf32>
      %cst_32 = arith.constant 7.000000e+00 : f32
      %61 = vector.broadcast %cst_32 : f32 to vector<1x1xf32>
      %62 = arith.divf %60, %61 : vector<1x1xf32>
      %c0_33 = arith.constant 0 : index
      %c0_34 = arith.constant 0 : index
      %63 = vector.load %arg5[%c0_33, %c0_34] : memref<1x2xf32, #tpu.memory_space<vmem>>, vector<1x1xf32>
      tpu.vector_store %arg5[%c0_33, %c0_34], %54 {strides = array<i32>} : memref<1x2xf32, #tpu.memory_space<vmem>>, vector<1x1xf32>,
      %64 = math.sqrt %62 : vector<1x1xf32>
      %c0_35 = arith.constant 0 : index
      %c1 = arith.constant 1 : index
      %65 = vector.load %arg5[%c0_35, %c1] : memref<1x2xf32, #tpu.memory_space<vmem>>, vector<1x1xf32>
      tpu.vector_store %arg5[%c0_35, %c1], %64 {strides = array<i32>} : memref<1x2xf32, #tpu.memory_space<vmem>>, vector<1x1xf32>,
    } else {
    }
    return
  }
  func.func @transform_0(%arg0: i32) -> (i32, i32) {
    %c0_i32 = arith.constant 0 : i32
    %c0_i32_0 = arith.constant 0 : i32
    return %arg0, %c0_i32 : i32, i32
  }
  func.func @transform_1(%arg0: i32) -> (i32, i32) {
    %c0_i32 = arith.constant 0 : i32
    %c0_i32_0 = arith.constant 0 : i32
    return %arg0, %c0_i32 : i32, i32
  }
  func.func @transform_2(%arg0: i32) -> (i32, i32) {
    %c0_i32 = arith.constant 0 : i32
    %c0_i32_0 = arith.constant 0 : i32
    %c0_i32_1 = arith.constant 0 : i32
    return %c0_i32, %c0_i32_0 : i32, i32
  }
  func.func @transform_3(%arg0: i32) -> (i32, i32) {
    %c0_i32 = arith.constant 0 : i32
    %c0_i32_0 = arith.constant 0 : i32
    return %c0_i32, %arg0 : i32, i32
  }
  func.func @transform_4(%arg0: i32) -> (i32, i32) {
    %c0_i32 = arith.constant 0 : i32
    %c0_i32_0 = arith.constant 0 : i32
    %c0_i32_1 = arith.constant 0 : i32
    return %c0_i32, %c0_i32_0 : i32, i32
  }
}

</mosaic_0001>

<llo_original>
// kernel: tpu_custom_call.1
$region0: #{tpu_custom_call.1}
  #allocation0 [shape = 'u32[]', space=smem, size = 0x4, offset = 0x4, fixed_abs, tag = 'smem constant byte address 0x4 - core index']
  #allocation1 [shape = 'u32[144,128]{1,0:T(1,128)}', space=vmem, size = 0x12000, scoped, tag = 'internal scratch']
  #allocation2 [shape = 'f32[1,1]{1,0:T(1,128)}', space=vmem, size = 0x200, scoped, tag = 'scratch operand']
  #allocation3 [shape = 'f32[1,1]{1,0:T(1,128)}', space=vmem, size = 0x200, scoped, tag = 'scratch operand']
  %s0 = inlined_call_operand.hbm [shape: bf16[8,256], index: 0, kind: input, shape index: {}]
  %s1 = inlined_call_operand.hbm [shape: bf16[8,256], index: 1, kind: input, shape index: {}]
  %s2 = inlined_call_operand.hbm [shape: bf16[256,256], index: 2, kind: input, shape index: {}]
  %s3 = inlined_call_operand.hbm [shape: f32[1,8], index: 3, kind: output, shape index: {0}]
  %s4 = inlined_call_operand.hbm [shape: f32[1,2], index: 4, kind: output, shape index: {1}]
  %5 = xla_tuple %s3, %s4
  %s6 = sld [smem:[#allocation0]]
  $region50: #{tpu_custom_call.1} parent=0
    _
  %s8 = ssub.s32 1, %s6
  %s9 = scalar_select 0, %s8, %s6
  $region1: #{tpu_custom_call.1} parent=0
    #allocation4 [shape = 'u8[4096]{0}', space=vmem, size = 0x1000, scoped, tag = 'input window, operand 0, single buffered']
    #allocation5 [shape = 's32[1]{0}', space=sflag, size = 0x4, scoped, tag = 'scoped memory for tpu_custom_call.1']
    #allocation6 [shape = 's32[1]{0}', space=sflag, size = 0x4, scoped, tag = 'scoped memory for tpu_custom_call.1']
    #allocation7 [shape = 'u8[4096]{0}', space=vmem, size = 0x1000, scoped, tag = 'input window, operand 1, single buffered']
    #allocation8 [shape = 's32[1]{0}', space=sflag, size = 0x4, scoped, tag = 'scoped memory for tpu_custom_call.1']
    #allocation9 [shape = 'u8[131072]{0}', space=vmem, size = 0x20000, scoped, tag = 'input window, operand 2, single buffered']
    #allocation10 [shape = 'u8[512]{0}', space=vmem, size = 0x400, scoped, tag = 'output window, operand 0, single buffered']
    #allocation11 [shape = 'u8[512]{0}', space=vmem, size = 0x400, scoped, tag = 'output window, operand 1, single buffered']
    #allocation12 [shape = 's32[1]{0}', space=sflag, size = 0x4, scoped, tag = 'scoped memory for tpu_custom_call.1']
    %10 = vsyncpa [#allocation5], 0
    %11 = vsyncpa [#allocation8], 0
    %12 = vsyncpa [#allocation6], 0
    %13 = vsyncpa [#allocation12], 0
    // Predicated region
    $region2: #{tpu_custom_call.1} parent=1 // pred_check
      _
    $region3: #{tpu_custom_call.1} parent=1 // pred_check_branch
      %15 = sbr.rel (0) target = $region5
    $region4: #{tpu_custom_call.1} parent=1 // pred_region
      %s17 = ssub.s32 128, 128
      %18 = vsyncadd [#allocation5], %s17
      %s20 = sshll.u32 [#allocation4], 4
      %s21 = int_to_ptr.vmem [resolvable:$true] %s20
      %23 = dma.hbm_to_vmem [thread:$0]  %s0, 128, %s21, [#allocation5]
    $region5: #{tpu_custom_call.1} parent=1 // pred_fallthru
      _
    // Predicated region
    $region6: #{tpu_custom_call.1} parent=1 // pred_check
      _
    $region7: #{tpu_custom_call.1} parent=1 // pred_check_branch
      %25 = sbr.rel (0) target = $region9
    $region8: #{tpu_custom_call.1} parent=1 // pred_region
      %s27 = ssub.s32 128, 128
      %28 = vsyncadd [#allocation8], %s27
      %s30 = sshll.u32 [#allocation7], 4
      %s31 = int_to_ptr.vmem [resolvable:$true] %s30
      %33 = dma.hbm_to_vmem [thread:$0]  %s1, 128, %s31, [#allocation8]
    $region9: #{tpu_custom_call.1} parent=1 // pred_fallthru
      _
    // Predicated region
    $region10: #{tpu_custom_call.1} parent=1 // pred_check
      _
    $region11: #{tpu_custom_call.1} parent=1 // pred_check_branch
      %35 = sbr.rel (0) target = $region13
    $region12: #{tpu_custom_call.1} parent=1 // pred_region
      %s37 = ssub.s32 4096, 4096
      %38 = vsyncadd [#allocation8], %s37
      %s39 = sshll.u32 [#allocation9], 4
      %s40 = int_to_ptr.vmem [resolvable:$true] %s39
      %45 = dma.hbm_to_vmem [thread:$0]  %s2, 4096, %s40, [#allocation8], 128, 128, 8
    $region13: #{tpu_custom_call.1} parent=1 // pred_fallthru
      _
    // Predicated region
    $region14: #{tpu_custom_call.1} parent=1 // pred_check
      _
    $region15: #{tpu_custom_call.1} parent=1 // pred_check_branch
      %47 = sbr.rel (0) target = $region17
    $region16: #{tpu_custom_call.1} parent=1 // pred_region
      %48 = dma.done [#allocation5], 128
    $region17: #{tpu_custom_call.1} parent=1 // pred_fallthru
      _
    // Predicated region
    $region18: #{tpu_custom_call.1} parent=1 // pred_check
      _
    $region19: #{tpu_custom_call.1} parent=1 // pred_check_branch
      %50 = sbr.rel (0) target = $region21
    $region20: #{tpu_custom_call.1} parent=1 // pred_region
      %51 = dma.done [#allocation8], 128
    $region21: #{tpu_custom_call.1} parent=1 // pred_fallthru
      _
    // Predicated region
    $region22: #{tpu_custom_call.1} parent=1 // pred_check
      _
    $region23: #{tpu_custom_call.1} parent=1 // pred_check_branch
      %53 = sbr.rel (0) target = $region25
    $region24: #{tpu_custom_call.1} parent=1 // pred_region
      %54 = dma.done [#allocation8], 4096
    $region25: #{tpu_custom_call.1} parent=1 // pred_fallthru
      _
    %p55 = scmp.eq.s32.totalorder 0, 0
    // Predicated region
    $region26: #{tpu_custom_call.1} parent=1 // pred_check
      %p56 = pneg %p55
    $region27: #{tpu_custom_call.1} parent=1 // pred_check_branch
      %58 = sbr.rel (%p56) target = $region29
    $region28: #{tpu_custom_call.1} parent=1 // pred_region
      %vm59 = vcmask 0
      %60 = vst.msk [vmem:[#allocation2] sm:$0x1] %vm59, 0.0
      %61 = vst.msk [vmem:[#allocation3] sm:$0x1] %vm59, 0.0
    $region29: #{tpu_custom_call.1} parent=1 // pred_fallthru
      _
    %v62 = vld [vmem:[#allocation4] sm:$0xff]
    %v63 = vld [vmem:[#allocation7] sm:$0xff]
    %v65 = vunpack.c.l.b16 %v62
    %v66 = vunpack.c.h.b16 %v62
    %v67 = vpack.c.b16 %v65, %v65
    %v68 = vpack.c.b16 %v66, %v66
    %v70 = vunpack.c.l.b16 %v63
    %v71 = vunpack.c.h.b16 %v63
    %v72 = vpack.c.b16 %v70, %v70
    %v73 = vpack.c.b16 %v71, %v71
    %vm74 = vcmask 1043456
    %v77 = vsel %vm74, %v67, %v72
    %v81 = vsel %vm74, %v68, %v73
    %v83 = vld [vmem:[#allocation9] sm:$0xff]
    %v84 = vld [vmem:[#allocation9 + $0x8] sm:$0xff]
    %v85 = vld [vmem:[#allocation9 + $0x10] sm:$0xff]
    %v86 = vld [vmem:[#allocation9 + $0x18] sm:$0xff]
    %v87 = vld [vmem:[#allocation9 + $0x20] sm:$0xff]
    %v88 = vld [vmem:[#allocation9 + $0x28] sm:$0xff]
    %v89 = vld [vmem:[#allocation9 + $0x30] sm:$0xff]
    %v90 = vld [vmem:[#allocation9 + $0x38] sm:$0xff]
    %v91 = vld [vmem:[#allocation9 + $0x40] sm:$0xff]
    %v92 = vld [vmem:[#allocation9 + $0x48] sm:$0xff]
    %v93 = vld [vmem:[#allocation9 + $0x50] sm:$0xff]
    %v94 = vld [vmem:[#allocation9 + $0x58] sm:$0xff]
    %v95 = vld [vmem:[#allocation9 + $0x60] sm:$0xff]
    %v96 = vld [vmem:[#allocation9 + $0x68] sm:$0xff]
    %v97 = vld [vmem:[#allocation9 + $0x70] sm:$0xff]
    %v98 = vld [vmem:[#allocation9 + $0x78] sm:$0xff]
    %v99 = vld [vmem:[#allocation9 + $0x80] sm:$0xff]
    %v100 = vld [vmem:[#allocation9 + $0x88] sm:$0xff]
    %v101 = vld [vmem:[#allocation9 + $0x90] sm:$0xff]
    %v102 = vld [vmem:[#allocation9 + $0x98] sm:$0xff]
    %v103 = vld [vmem:[#allocation9 + $0xa0] sm:$0xff]
    %v104 = vld [vmem:[#allocation9 + $0xa8] sm:$0xff]
    %v105 = vld [vmem:[#allocation9 + $0xb0] sm:$0xff]
    %v106 = vld [vmem:[#allocation9 + $0xb8] sm:$0xff]
    %v107 = vld [vmem:[#allocation9 + $0xc0] sm:$0xff]
    %v108 = vld [vmem:[#allocation9 + $0xc8] sm:$0xff]
    %v109 = vld [vmem:[#allocation9 + $0xd0] sm:$0xff]
    %v110 = vld [vmem:[#allocation9 + $0xd8] sm:$0xff]
    %v111 = vld [vmem:[#allocation9 + $0xe0] sm:$0xff]
    %v112 = vld [vmem:[#allocation9 + $0xe8] sm:$0xff]
    %v113 = vld [vmem:[#allocation9 + $0xf0] sm:$0xff]
    %v114 = vld [vmem:[#allocation9 + $0xf8] sm:$0xff]
    %v147 = vunpack.c.l.b16 %v83
    %v148 = vunpack.c.h.b16 %v83
    %v149 = vunpack.c.l.b16 %v84
    %v150 = vunpack.c.h.b16 %v84
    %v151 = vunpack.c.l.b16 %v85
    %v152 = vunpack.c.h.b16 %v85
    %v153 = vunpack.c.l.b16 %v86
    %v154 = vunpack.c.h.b16 %v86
    %v155 = vunpack.c.l.b16 %v87
    %v156 = vunpack.c.h.b16 %v87
    %v157 = vunpack.c.l.b16 %v88
    %v158 = vunpack.c.h.b16 %v88
    %v159 = vunpack.c.l.b16 %v89
    %v160 = vunpack.c.h.b16 %v89
    %v161 = vunpack.c.l.b16 %v90
    %v162 = vunpack.c.h.b16 %v90
    %v163 = vunpack.c.l.b16 %v91
    %v164 = vunpack.c.h.b16 %v91
    %v165 = vunpack.c.l.b16 %v92
    %v166 = vunpack.c.h.b16 %v92
    %v167 = vunpack.c.l.b16 %v93
    %v168 = vunpack.c.h.b16 %v93
    %v169 = vunpack.c.l.b16 %v94
    %v170 = vunpack.c.h.b16 %v94
    %v171 = vunpack.c.l.b16 %v95
    %v172 = vunpack.c.h.b16 %v95
    %v173 = vunpack.c.l.b16 %v96
    %v174 = vunpack.c.h.b16 %v96
    %v175 = vunpack.c.l.b16 %v97
    %v176 = vunpack.c.h.b16 %v97
    %v177 = vunpack.c.l.b16 %v98
    %v178 = vunpack.c.h.b16 %v98
    %v179 = vunpack.c.l.b16 %v99
    %v180 = vunpack.c.h.b16 %v99
    %v181 = vunpack.c.l.b16 %v100
    %v182 = vunpack.c.h.b16 %v100
    %v183 = vunpack.c.l.b16 %v101
    %v184 = vunpack.c.h.b16 %v101
    %v185 = vunpack.c.l.b16 %v102
    %v186 = vunpack.c.h.b16 %v102
    %v187 = vunpack.c.l.b16 %v103
    %v188 = vunpack.c.h.b16 %v103
    %v189 = vunpack.c.l.b16 %v104
    %v190 = vunpack.c.h.b16 %v104
    %v191 = vunpack.c.l.b16 %v105
    %v192 = vunpack.c.h.b16 %v105
    %v193 = vunpack.c.l.b16 %v106
    %v194 = vunpack.c.h.b16 %v106
    %v195 = vunpack.c.l.b16 %v107
    %v196 = vunpack.c.h.b16 %v107
    %v197 = vunpack.c.l.b16 %v108
    %v198 = vunpack.c.h.b16 %v108
    %v199 = vunpack.c.l.b16 %v109
    %v200 = vunpack.c.h.b16 %v109
    %v201 = vunpack.c.l.b16 %v110
    %v202 = vunpack.c.h.b16 %v110
    %v203 = vunpack.c.l.b16 %v111
    %v204 = vunpack.c.h.b16 %v111
    %v205 = vunpack.c.l.b16 %v112
    %v206 = vunpack.c.h.b16 %v112
    %v207 = vunpack.c.l.b16 %v113
    %v208 = vunpack.c.h.b16 %v113
    %v209 = vunpack.c.l.b16 %v114
    %v210 = vunpack.c.h.b16 %v114
    %v211 = vpack.c.b16 %v149, %v147
    %v212 = vpack.c.b16 %v150, %v148
    %v213 = vpack.c.b16 %v153, %v151
    %v214 = vpack.c.b16 %v154, %v152
    %v215 = vpack.c.b16 %v157, %v155
    %v216 = vpack.c.b16 %v158, %v156
    %v217 = vpack.c.b16 %v161, %v159
    %v218 = vpack.c.b16 %v162, %v160
    %v219 = vpack.c.b16 %v165, %v163
    %v220 = vpack.c.b16 %v166, %v164
    %v221 = vpack.c.b16 %v169, %v167
    %v222 = vpack.c.b16 %v170, %v168
    %v223 = vpack.c.b16 %v173, %v171
    %v224 = vpack.c.b16 %v174, %v172
    %v225 = vpack.c.b16 %v177, %v175
    %v226 = vpack.c.b16 %v178, %v176
    %v227 = vpack.c.b16 %v181, %v179
    %v228 = vpack.c.b16 %v182, %v180
    %v229 = vpack.c.b16 %v185, %v183
    %v230 = vpack.c.b16 %v186, %v184
    %v231 = vpack.c.b16 %v189, %v187
    %v232 = vpack.c.b16 %v190, %v188
    %v233 = vpack.c.b16 %v193, %v191
    %v234 = vpack.c.b16 %v194, %v192
    %v235 = vpack.c.b16 %v197, %v195
    %v236 = vpack.c.b16 %v198, %v196
    %v237 = vpack.c.b16 %v201, %v199
    %v238 = vpack.c.b16 %v202, %v200
    %v239 = vpack.c.b16 %v205, %v203
    %v240 = vpack.c.b16 %v206, %v204
    %v241 = vpack.c.b16 %v209, %v207
    %v242 = vpack.c.b16 %v210, %v208
    %275 = vmatprep.subr.bf16.mxu0 %v226
    %276 = vmatpush1.bf16.msra.mxu0 %v225
    %277 = vmatprep.subr.bf16.mxu0 %v224
    %278 = vmatpush1.bf16.msra.mxu0 %v223
    %279 = vmatprep.subr.bf16.mxu0 %v222
    %280 = vmatpush1.bf16.msra.mxu0 %v221
    %281 = vmatprep.subr.bf16.mxu0 %v220
    %282 = vmatpush1.bf16.msra.mxu0 %v219
    %283 = vmatprep.subr.bf16.mxu0 %v218
    %284 = vmatpush1.bf16.msra.mxu0 %v217
    %285 = vmatprep.subr.bf16.mxu0 %v216
    %286 = vmatpush1.bf16.msra.mxu0 %v215
    %287 = vmatprep.subr.bf16.mxu0 %v214
    %288 = vmatpush1.bf16.msra.mxu0 %v213
    %289 = vmatprep.subr.bf16.mxu0 %v212
    %290 = vmatpush1.bf16.msra.mxu0 %v211
    %291 = vmatprep.subr.bf16.mxu0 %v242
    %292 = vmatpush2.bf16.msra.mxu0 %v241
    %293 = vmatprep.subr.bf16.mxu0 %v240
    %294 = vmatpush2.bf16.msra.mxu0 %v239
    %295 = vmatprep.subr.bf16.mxu0 %v238
    %296 = vmatpush2.bf16.msra.mxu0 %v237
    %297 = vmatprep.subr.bf16.mxu0 %v236
    %298 = vmatpush2.bf16.msra.mxu0 %v235
    %299 = vmatprep.subr.bf16.mxu0 %v234
    %300 = vmatpush2.bf16.msra.mxu0 %v233
    %301 = vmatprep.subr.bf16.mxu0 %v232
    %302 = vmatpush2.bf16.msra.mxu0 %v231
    %303 = vmatprep.subr.bf16.mxu0 %v230
    %304 = vmatpush2.bf16.msra.mxu0 %v229
    %305 = vmatprep.subr.bf16.mxu0 %v228
    %306 = vmatpush2.bf16.msra.mxu0 %v227
    %307 = vmatprep.mubr.bf16.mxu0 %v81
    %308 = vmatmul.mubr.bf16.gmra.mxu0 %v77
    %v309 = vpop.f32.mrf.mxu0
    %v310 = vadd.f32 0.0, %v309
    %v311 = vpop.f32.mrf.mxu0
    %v312 = vpop.f32.mrf.mxu0
    %v313 = vpop.f32.mrf.mxu0
    %v314 = vadd.f32 0.0, %v313
    %315 = vdwg.mxu0
    %v316 = vmul.f32 %v310, %v314
    %v317 = vmul.f32 %v310, %v310
    %v318 = vmul.f32 %v314, %v314
    %319 = vadd.xlane.f32.xlu0 %v316
    %v320 = vpop.xlane.xlu0 %319
    %321 = vadd.xlane.f32.xlu0 %v317
    %v322 = vpop.xlane.xlu0 %321
    %323 = vadd.xlane.f32.xlu0 %v318
    %v324 = vpop.xlane.xlu0 %323
    %v325 = vmax.f32 %v322, 1e-16
    %v326 = vrsqrt.pop %v325
    %v327 = vmax.f32 %v324, 1e-16
    %v328 = vrsqrt.pop %v327
    %v329 = vmul.f32 %v326, %v328
    %v330 = vmul.f32 %v320, %v329
    %v332 = vlaneseq
    %v333 = vand.u32 %v332, 127
    %v334 = vlaneseq
    %v335 = vshrl.u32 %v334, 7
    %v336 = vsub.s32 %v333, %v335
    %v337 = vrot.slane %v330, %v336
    %vm339 = vcmask 57344
    %340 = vst.msk [vmem:[#allocation10] sm:$0x1] %vm339, %v337
    %s341 = smul.u32 0, 8
    %v342 = vstv %s341
    %v343 = vadd.s32 %v342, %v333
    %vm344 = vcmp.lt.s32.totalorder %v343, 8
    %v345 = vsel %vm344, %v337, 0.0
    %v346 = vld [vmem:[#allocation2] sm:$0x1]
    %v347 = vsel %vm339, %v345, 0.0
    %348 = vadd.xlane.f32.xlu0 %v347
    %v349 = vpop.xlane.xlu0 %348
    %v350 = vadd.f32 %v346, %v349
    %vm351 = vcmask 0
    %352 = vst.msk [vmem:[#allocation2] sm:$0x1] %vm351, %v350
    %v353 = vld [vmem:[#allocation3] sm:$0x1]
    %v354 = vmul.f32 %v345, %v345
    %v355 = vsel %vm339, %v354, 0.0
    %356 = vadd.xlane.f32.xlu0 %v355
    %v357 = vpop.xlane.xlu0 %356
    %v358 = vadd.f32 %v353, %v357
    %359 = vst.msk [vmem:[#allocation3] sm:$0x1] %vm351, %v358
    // Predicated region
    $region30: #{tpu_custom_call.1} parent=1 // pred_check
      %p360 = pneg %p55
    $region31: #{tpu_custom_call.1} parent=1 // pred_check_branch
      %362 = sbr.rel (%p360) target = $region33
    $region32: #{tpu_custom_call.1} parent=1 // pred_region
      %v363 = vld [vmem:[#allocation2] sm:$0x1]
      %v364 = vld [vmem:[#allocation3] sm:$0x1]
      %v365 = vrcp.pop 8.0
      %v366 = vmul.f32 %v363, %v365
      %v367 = vmul.f32 %v363, %v363
      %v368 = vmul.f32 %v367, %v365
      %v369 = vsub.f32 %v364, %v368
      %v370 = vmax.f32 %v369, 0.0
      %v371 = vrcp.pop 7.0
      %v372 = vmul.f32 %v370, %v371
      %373 = vst.msk [vmem:[#allocation11] sm:$0x1] %vm351, %v366
      %v374 = vrsqrt.pop %v372
      %v375 = vmul.f32 %v372, %v374
      %vm376 = vcmp.eq.f32.partialorder %v372, inf
      %v377 = vsel %vm376, %v372, %v375
      %vm378 = vcmp.eq.f32.partialorder %v372, 0.0
      %v379 = vand.u32 %v372, 2147483648
      %v380 = vsel %vm378, %v379, %v377
      %v382 = vlaneseq
      %v383 = vshrl.u32 %v382, 7
      %v384 = vsub.s32 0, %v383
      %v385 = vrot.slane %v380, %v384
      %386 = vrot.lane.b32.xlu0 %v385, 1
      %v387 = vpop.permute.xlu0 %386
      %vm389 = vcmask 8200
      %390 = vst.msk [vmem:[#allocation11] sm:$0x1] %vm389, %v387
    $region33: #{tpu_custom_call.1} parent=1 // pred_fallthru
      _
    // Predicated region
    $region34: #{tpu_custom_call.1} parent=1 // pred_check
      _
    $region35: #{tpu_custom_call.1} parent=1 // pred_check_branch
      %392 = sbr.rel (0) target = $region37
    $region36: #{tpu_custom_call.1} parent=1 // pred_region
      %s394 = ssub.s32 16, 16
      %395 = vsyncadd [#allocation6], %s394
      %s397 = sshll.u32 [#allocation10], 4
      %s398 = int_to_ptr.vmem [resolvable:$true] %s397
      %400 = dma.vmem_to_hbm [thread:$0]  %s398, 16, %s3, [#allocation6]
    $region37: #{tpu_custom_call.1} parent=1 // pred_fallthru
      _
    // Predicated region
    $region38: #{tpu_custom_call.1} parent=1 // pred_check
      _
    $region39: #{tpu_custom_call.1} parent=1 // pred_check_branch
      %402 = sbr.rel (0) target = $region41
    $region40: #{tpu_custom_call.1} parent=1 // pred_region
      %s404 = ssub.s32 16, 16
      %405 = vsyncadd [#allocation12], %s404
      %s407 = sshll.u32 [#allocation11], 4
      %s408 = int_to_ptr.vmem [resolvable:$true] %s407
      %410 = dma.vmem_to_hbm [thread:$0]  %s408, 16, %s4, [#allocation12]
    $region41: #{tpu_custom_call.1} parent=1 // pred_fallthru
      _
    // Predicated region
    $region42: #{tpu_custom_call.1} parent=1 // pred_check
      _
    $region43: #{tpu_custom_call.1} parent=1 // pred_check_branch
      %412 = sbr.rel (0) target = $region45
    $region44: #{tpu_custom_call.1} parent=1 // pred_region
      %413 = dma.done [#allocation6], 16
    $region45: #{tpu_custom_call.1} parent=1 // pred_fallthru
      _
    // Predicated region
    $region46: #{tpu_custom_call.1} parent=1 // pred_check
      _
    $region47: #{tpu_custom_call.1} parent=1 // pred_check_branch
      %415 = sbr.rel (0) target = $region49
    $region48: #{tpu_custom_call.1} parent=1 // pred_region
      %416 = dma.done [#allocation12], 16
    $region49: #{tpu_custom_call.1} parent=1 // pred_fallthru
      _
    %417 = vsyncpa [#allocation5], 1
    %418 = vsyncpa [#allocation8], 1
    %419 = vsyncpa [#allocation6], 1
    %420 = vsyncpa [#allocation12], 1

</llo_original>
